<compile_context>
chip_gen: v7x
topology: tpu7x:2x2x1
jax: 0.10.0
libtpu: 0.0.40
codegen_flags: <defaults>
</compile_context>

<pallas_src>
import functools

import jax
import jax.numpy as jnp
from jax.experimental import pallas as pl
from jax.experimental.pallas import tpu as pltpu

LOC_FEAT_DIM = 5 + 25  # 30, fixed by the module
_SUBLANE = 8


def _round_up(x, m):
    return ((x + m - 1) // m) * m


def _loc_decoder_kernel(score_ref, feats_ref, expand_ref, w_ref, b_ref, out_ref,
                        *, compute_dtype):
    # score_ref:  (TB, N)       feats_ref: (TB, N*F)   lane-dense flat slab
    # expand_ref: (N, N*F)      0/1 matrix, expand[n, n*F + f] = 1
    # w_ref:      (N*F, J)      pre-tiled Linear weight (W^T repeated over N)
    # b_ref:      (1, J)        bias (f32)
    # out_ref:    (TB, J)
    #
    # NOTE: rows >= B in the ragged last batch tile hold undefined data; all
    # math below is row-independent and those output rows are never written
    # back, so the garbage stays confined and discarded.
    score = score_ref[...].astype(compute_dtype)            # (TB, N)
    feats = feats_ref[...].astype(compute_dtype)            # (TB, NF)

    # Broadcast score over the flattened (n, f) axis with an exact 0/1 matmul
    # on the MXU (avoids any in-kernel reshape or lane gather).
    score_exp = jnp.dot(score, expand_ref[...],
                        preferred_element_type=jnp.float32).astype(compute_dtype)

    scored = score_exp * feats                               # (TB, NF), VPU

    # Single MXU contraction over the fused N*F axis (K = N*30), f32 accumulate.
    out = jnp.dot(scored, w_ref[...], preferred_element_type=jnp.float32)
    out_ref[...] = (out + b_ref[...]).astype(out_ref.dtype)


def location_decoder(loc_feats, total_ann_score, weight, bias, *, block_b=512):
    """LocationDecoder forward.

    loc_feats:        (B, N, 30) or flat (B, N*30).  Prefer handing the flat
                      slab straight from the producer: the 3-D tiled HBM layout
                      pads 30 -> 128 lanes and flattening it here costs one XLA
                      relayout copy.
    total_ann_score:  (B, N)
    weight:           (jemb_dim, 30)  PyTorch Linear layout (out, in)
    bias:             (jemb_dim,)
    returns           (B, jemb_dim); dtype follows input/weight promotion.
    """
    B, N = total_ann_score.shape
    F = LOC_FEAT_DIM
    NF = N * F
    J = weight.shape[0]
    assert weight.shape == (J, F)

    if loc_feats.ndim == 3:
        assert loc_feats.shape == (B, N, F)
        feats_flat = loc_feats.reshape(B, NF)
    else:
        assert loc_feats.shape == (B, NF)
        feats_flat = loc_feats

    compute_dtype = jnp.result_type(feats_flat.dtype, total_ann_score.dtype)
    out_dtype = jnp.result_type(compute_dtype, weight.dtype)

    # Batch tile: sublane granule; capped for (a) megacore (grid >= 2 whenever
    # B > 8 so both v7x TensorCores get work) and (b) a conservative VMEM
    # budget for the double-buffered activation tiles.
    tb = min(block_b, _round_up(B, _SUBLANE))
    if B > _SUBLANE:
        tb = min(tb, _round_up(pl.cdiv(B, 2), _SUBLANE))
    act_bytes_per_row = (
        2 * NF * compute_dtype.itemsize        # feats double buffer
        + 2 * N * compute_dtype.itemsize       # score double buffer
        + 2 * J * out_dtype.itemsize           # output double buffer
        + 2 * NF * 4                           # in-flight f32 temporaries
    )
    vmem_budget = 6 * 1024 * 1024
    max_tb = max(_SUBLANE,
                 (vmem_budget // max(act_bytes_per_row, 1)) // _SUBLANE * _SUBLANE)
    tb = max(_SUBLANE, min(tb, max_tb))
    grid_b = pl.cdiv(B, tb)

    # Small, VMEM-resident parameters (constant index maps -> fetched once).
    # Weight stays in the activation compute dtype; bias adds in f32.
    w_flat = jnp.tile(weight.T.astype(compute_dtype), (N, 1))         # (NF, J)
    expand = jnp.repeat(jnp.eye(N, dtype=compute_dtype), F, axis=1)   # (N, NF)
    b2 = bias.astype(jnp.float32).reshape(1, J)                       # (1, J)

    kernel = functools.partial(_loc_decoder_kernel, compute_dtype=compute_dtype)

    cost = pl.CostEstimate(
        flops=2 * B * N * NF + B * NF + 2 * B * NF * J + B * J,
        transcendentals=0,
        bytes_accessed=(
            B * N * total_ann_score.dtype.itemsize
            + B * NF * feats_flat.dtype.itemsize
            + N * NF * compute_dtype.itemsize
            + NF * J * compute_dtype.itemsize
            + J * 4
            + B * J * out_dtype.itemsize),
    )

    out = pl.pallas_call(
        kernel,
        out_shape=jax.ShapeDtypeStruct((B, J), out_dtype),
        grid_spec=pltpu.PrefetchScalarGridSpec(
            num_scalar_prefetch=0,
            grid=(grid_b,),
            in_specs=[
                pl.BlockSpec((tb, N), lambda i: (i, 0)),    # score tile
                pl.BlockSpec((tb, NF), lambda i: (i, 0)),   # flat feats tile
                pl.BlockSpec((N, NF), lambda i: (0, 0)),    # expansion matrix (resident)
                pl.BlockSpec((NF, J), lambda i: (0, 0)),    # tiled weight (resident)
                pl.BlockSpec((1, J), lambda i: (0, 0)),     # bias (resident)
            ],
            out_specs=pl.BlockSpec((tb, J), lambda i: (i, 0)),
        ),
        compiler_params=pltpu.CompilerParams(
            dimension_semantics=("parallel",)),
        cost_estimate=cost,
    )(total_ann_score, feats_flat, expand, w_flat, b2)

    return out


if __name__ == "__main__":
    key = jax.random.PRNGKey(0)
    k1, k2, k3, k4 = jax.random.split(key, 4)

    B, N, J = 2, 8, 32          # batch, num annotations, jemb_dim
    F = LOC_FEAT_DIM            # 30

    loc_feats = jax.random.normal(k1, (B, N, F), dtype=jnp.float32)
    total_ann_score = jax.nn.softmax(
        jax.random.normal(k2, (B, N), dtype=jnp.float32), axis=-1)

    # Deterministic synthetic Linear(30, jemb_dim) params (PyTorch layout: (out, in)).
    weight = jax.random.normal(k3, (J, F), dtype=jnp.float32) * 0.1
    bias = jax.random.normal(k4, (J,), dtype=jnp.float32) * 0.1

    out = location_decoder(loc_feats, total_ann_score, weight, bias)
    out = jax.block_until_ready(out)

    # Pure-JAX reference for sanity (tolerance sized for the MXU f32 path).
    fuse_ref = jnp.einsum("bn,bnf->bf", total_ann_score, loc_feats)
    ref = fuse_ref @ weight.T + bias
    assert out.shape == (B, J)
    assert jnp.allclose(out, ref, atol=1e-3, rtol=1e-3)

    print("KERNEL_OK")
</pallas_src>

<mosaic_0001>
module attributes {stable_mosaic.version = 11 : i64} {
  func.func @_loc_decoder_kernel(%arg0: i32, %arg1: memref<8x8xf32, #tpu.memory_space<vmem>>, %arg2: memref<8x240xf32, #tpu.memory_space<vmem>>, %arg3: memref<8x240xf32, #tpu.memory_space<vmem>>, %arg4: memref<240x32xf32, #tpu.memory_space<vmem>>, %arg5: memref<1x32xf32, #tpu.memory_space<vmem>>, %arg6: memref<8x32xf32, #tpu.memory_space<vmem>>) attributes {dimension_semantics = [#tpu.dimension_semantics<parallel>], iteration_bounds = array<i64: 1>, scalar_prefetch = 0 : i64, scratch_operands = 0 : i64, tpu.core_type = #tpu.core_type<tc>, window_params = [{transform_indices = @transform_0, window_bounds = array<i64: 8, 8>}, {transform_indices = @transform_1, window_bounds = array<i64: 8, 240>}, {pipeline_mode = #tpu.pipeline_mode<synchronous>, transform_indices = @transform_2, window_bounds = array<i64: 8, 240>}, {pipeline_mode = #tpu.pipeline_mode<synchronous>, transform_indices = @transform_3, window_bounds = array<i64: 240, 32>}, {pipeline_mode = #tpu.pipeline_mode<synchronous>, transform_indices = @transform_4, window_bounds = array<i64: 1, 32>}, {transform_indices = @transform_5, window_bounds = array<i64: 8, 32>}]} {
    %c0 = arith.constant 0 : index
    %c0_0 = arith.constant 0 : index
    %0 = vector.load %arg1[%c0, %c0_0] : memref<8x8xf32, #tpu.memory_space<vmem>>, vector<8x8xf32>
    %c0_1 = arith.constant 0 : index
    %c0_2 = arith.constant 0 : index
    %1 = vector.load %arg2[%c0_1, %c0_2] : memref<8x240xf32, #tpu.memory_space<vmem>>, vector<8x240xf32>
    %c0_3 = arith.constant 0 : index
    %c0_4 = arith.constant 0 : index
    %2 = vector.load %arg3[%c0_3, %c0_4] : memref<8x240xf32, #tpu.memory_space<vmem>>, vector<8x240xf32>
    %cst = arith.constant dense<0.000000e+00> : vector<8x240xf32>
    %3 = tpu.matmul %0, %2, %cst {dimension_numbers = #tpu.dot_dimension_numbers<[1], [0], [0], [1], [0, 0, 1, 1], [], []>} : vector<8x8xf32>, vector<8x240xf32>, vector<8x240xf32> -> vector<8x240xf32>
    %4 = arith.mulf %3, %1 : vector<8x240xf32>
    %c0_5 = arith.constant 0 : index
    %c0_6 = arith.constant 0 : index
    %5 = vector.load %arg4[%c0_5, %c0_6] : memref<240x32xf32, #tpu.memory_space<vmem>>, vector<240x32xf32>
    %cst_7 = arith.constant dense<0.000000e+00> : vector<8x32xf32>
    %6 = tpu.matmul %4, %5, %cst_7 {dimension_numbers = #tpu.dot_dimension_numbers<[1], [0], [0], [1], [0, 0, 1, 1], [], []>} : vector<8x240xf32>, vector<240x32xf32>, vector<8x32xf32> -> vector<8x32xf32>
    %c0_8 = arith.constant 0 : index
    %c0_9 = arith.constant 0 : index
    %7 = vector.load %arg5[%c0_8, %c0_9] : memref<1x32xf32, #tpu.memory_space<vmem>>, vector<1x32xf32>
    %8 = vector.broadcast %7 : vector<1x32xf32> to vector<8x32xf32>
    %9 = arith.addf %6, %8 : vector<8x32xf32>
    %c0_10 = arith.constant 0 : index
    %c0_11 = arith.constant 0 : index
    %10 = vector.load %arg6[%c0_10, %c0_11] : memref<8x32xf32, #tpu.memory_space<vmem>>, vector<8x32xf32>
    tpu.vector_store %arg6[%c0_10, %c0_11], %9 {strides = array<i32>} : memref<8x32xf32, #tpu.memory_space<vmem>>, vector<8x32xf32>,
    return
  }
  func.func @transform_0(%arg0: i32) -> (i32, i32) {
    %c0_i32 = arith.constant 0 : i32
    %c0_i32_0 = arith.constant 0 : i32
    return %arg0, %c0_i32 : i32, i32
  }
  func.func @transform_1(%arg0: i32) -> (i32, i32) {
    %c0_i32 = arith.constant 0 : i32
    %c0_i32_0 = arith.constant 0 : i32
    return %arg0, %c0_i32 : i32, i32
  }
  func.func @transform_2(%arg0: i32) -> (i32, i32) {
    %c0_i32 = arith.constant 0 : i32
    %c0_i32_0 = arith.constant 0 : i32
    %c0_i32_1 = arith.constant 0 : i32
    return %c0_i32, %c0_i32_0 : i32, i32
  }
  func.func @transform_3(%arg0: i32) -> (i32, i32) {
    %c0_i32 = arith.constant 0 : i32
    %c0_i32_0 = arith.constant 0 : i32
    %c0_i32_1 = arith.constant 0 : i32
    return %c0_i32, %c0_i32_0 : i32, i32
  }
  func.func @transform_4(%arg0: i32) -> (i32, i32) {
    %c0_i32 = arith.constant 0 : i32
    %c0_i32_0 = arith.constant 0 : i32
    %c0_i32_1 = arith.constant 0 : i32
    return %c0_i32, %c0_i32_0 : i32, i32
  }
  func.func @transform_5(%arg0: i32) -> (i32, i32) {
    %c0_i32 = arith.constant 0 : i32
    %c0_i32_0 = arith.constant 0 : i32
    return %arg0, %c0_i32 : i32, i32
  }
}

</mosaic_0001>

<llo_original>
// kernel: tpu_custom_call.1
$region0: #{tpu_custom_call.1}
  #allocation0 [shape = 'u32[]', space=smem, size = 0x4, offset = 0x4, fixed_abs, tag = 'smem constant byte address 0x4 - core index']
  #allocation1 [shape = 'u32[144,128]{1,0:T(1,128)}', space=vmem, size = 0x12000, scoped, tag = 'internal scratch']
  %s0 = inlined_call_operand.vmem [shape: f32[2,8], index: 0, kind: input, shape index: {}]
  %s1 = inlined_call_operand.vmem [shape: f32[2,240], index: 1, kind: input, shape index: {}]
  %s2 = inlined_call_operand.vmem [shape: f32[8,240], index: 2, kind: input, shape index: {}]
  %s3 = inlined_call_operand.vmem [shape: f32[240,32], index: 3, kind: input, shape index: {}]
  %s4 = inlined_call_operand.vmem [shape: f32[1,32], index: 4, kind: input, shape index: {}]
  %s5 = inlined_call_operand.hbm [shape: f32[2,32], index: 5, kind: output, shape index: {}]
  %s6 = sld [smem:[#allocation0]]
  $region30: #{tpu_custom_call.1} parent=0
    _
  %s8 = ssub.s32 1, %s6
  %s9 = scalar_select 0, %s8, %s6
  $region1: #{tpu_custom_call.1} parent=0
    #allocation2 [shape = 'u8[4096]{0}', space=vmem, size = 0x1000, scoped, tag = 'output window, operand 0, single buffered']
    #allocation3 [shape = 's32[1]{0}', space=sflag, size = 0x4, scoped, tag = 'scoped memory for tpu_custom_call.1']
    %10 = vsyncpa [#allocation3], 0
    // Predicated region
    $region2: #{tpu_custom_call.1} parent=1 // pred_check
      _
    $region3: #{tpu_custom_call.1} parent=1 // pred_check_branch
      %12 = sbr.rel (0) target = $region5
    $region4: #{tpu_custom_call.1} parent=1 // pred_region
      _
    $region5: #{tpu_custom_call.1} parent=1 // pred_fallthru
      _
    // Predicated region
    $region6: #{tpu_custom_call.1} parent=1 // pred_check
      _
    $region7: #{tpu_custom_call.1} parent=1 // pred_check_branch
      %14 = sbr.rel (0) target = $region9
    $region8: #{tpu_custom_call.1} parent=1 // pred_region
      _
    $region9: #{tpu_custom_call.1} parent=1 // pred_fallthru
      _
    // Predicated region
    $region10: #{tpu_custom_call.1} parent=1 // pred_check
      _
    $region11: #{tpu_custom_call.1} parent=1 // pred_check_branch
      %16 = sbr.rel (0) target = $region13
    $region12: #{tpu_custom_call.1} parent=1 // pred_region
      _
    $region13: #{tpu_custom_call.1} parent=1 // pred_fallthru
      _
    // Predicated region
    $region14: #{tpu_custom_call.1} parent=1 // pred_check
      _
    $region15: #{tpu_custom_call.1} parent=1 // pred_check_branch
      %18 = sbr.rel (0) target = $region17
    $region16: #{tpu_custom_call.1} parent=1 // pred_region
      _
    $region17: #{tpu_custom_call.1} parent=1 // pred_fallthru
      _
    // Predicated region
    $region18: #{tpu_custom_call.1} parent=1 // pred_check
      _
    $region19: #{tpu_custom_call.1} parent=1 // pred_check_branch
      %20 = sbr.rel (0) target = $region21
    $region20: #{tpu_custom_call.1} parent=1 // pred_region
      _
    $region21: #{tpu_custom_call.1} parent=1 // pred_fallthru
      _
    %v21 = vld [vmem:[%s0] sm:$0xff]
    %v22 = vld [vmem:[%s1] sm:$0xf]
    %v23 = vld [vmem:[%s1 + $0x4] sm:$0xf]
    %v24 = vld [vmem:[%s1 + $0x8] sm:$0xf]
    %v25 = vld [vmem:[%s1 + $0xc] sm:$0xf]
    %v26 = vld [vmem:[%s2] sm:$0xff]
    %v27 = vld [vmem:[%s2 + $0x8] sm:$0xff]
    %vm28 = vcmask 64512
    %v30 = vsel %vm28, %v21, 0
    %32 = vmatprep.subr.mxu0 %v27
    %33 = vmatpush1.msra.mxu0 %v26
    %34 = vmatprep.subr.mxu0 0.0
    %35 = vmatpush1.msra.mxu0 0.0
    %36 = vmatprep.subr.mxu0 0.0
    %37 = vmatpush1.msra.mxu0 0.0
    %38 = vmatprep.subr.mxu0 0.0
    %39 = vmatpush1.msra.mxu0 0.0
    %40 = vmatprep.subr.mxu0 0.0
    %41 = vmatpush1.msra.mxu0 0.0
    %42 = vmatprep.subr.mxu0 0.0
    %43 = vmatpush1.msra.mxu0 0.0
    %44 = vmatprep.subr.mxu0 0.0
    %45 = vmatpush1.msra.mxu0 0.0
    %46 = vmatprep.subr.mxu0 0.0
    %47 = vmatpush1.msra.mxu0 0.0
    %48 = vmatprep.subr.mxu0 0.0
    %49 = vmatpush1.msra.mxu0 0.0
    %50 = vmatprep.subr.mxu0 0.0
    %51 = vmatpush1.msra.mxu0 0.0
    %52 = vmatprep.subr.mxu0 0.0
    %53 = vmatpush1.msra.mxu0 0.0
    %54 = vmatprep.subr.mxu0 0.0
    %55 = vmatpush1.msra.mxu0 0.0
    %56 = vmatprep.subr.mxu0 0.0
    %57 = vmatpush1.msra.mxu0 0.0
    %58 = vmatprep.subr.mxu0 0.0
    %59 = vmatpush1.msra.mxu0 0.0
    %60 = vmatprep.subr.mxu0 0.0
    %61 = vmatpush1.msra.mxu0 0.0
    %62 = vmatprep.subr.mxu0 0.0
    %63 = vmatpush1.msra.mxu0 0.0
    %64 = vmatprep.subr.mxu0 0.0
    %65 = vmatpush1.msra.mxu0 0.0
    %66 = vmatprep.subr.mxu0 0.0
    %67 = vmatpush1.msra.mxu0 0.0
    %68 = vmatprep.subr.mxu0 0.0
    %69 = vmatpush1.msra.mxu0 0.0
    %70 = vmatprep.subr.mxu0 0.0
    %71 = vmatpush1.msra.mxu0 0.0
    %72 = vmatprep.subr.mxu0 0.0
    %73 = vmatpush1.msra.mxu0 0.0
    %74 = vmatprep.subr.mxu0 0.0
    %75 = vmatpush1.msra.mxu0 0.0
    %76 = vmatprep.subr.mxu0 0.0
    %77 = vmatpush1.msra.mxu0 0.0
    %78 = vmatprep.subr.mxu0 0.0
    %79 = vmatpush1.msra.mxu0 0.0
    %80 = vmatprep.subr.mxu0 0.0
    %81 = vmatpush1.msra.mxu0 0.0
    %82 = vmatprep.subr.mxu0 0.0
    %83 = vmatpush1.msra.mxu0 0.0
    %84 = vmatprep.subr.mxu0 0.0
    %85 = vmatpush1.msra.mxu0 0.0
    %86 = vmatprep.subr.mxu0 0.0
    %87 = vmatpush1.msra.mxu0 0.0
    %88 = vmatprep.subr.mxu0 0.0
    %89 = vmatpush1.msra.mxu0 0.0
    %90 = vmatprep.subr.mxu0 0.0
    %91 = vmatpush1.msra.mxu0 0.0
    %92 = vmatprep.subr.mxu0 0.0
    %93 = vmatpush1.msra.mxu0 0.0
    %94 = vmatprep.subr.mxu0 0.0
    %95 = vmatpush1.msra.mxu0 0.0
    %96 = vmatprep.mubr.f32.mxu0 0.0
    %97 = vmatmul.mubr.f32.gmra.mrb[0].mxu0 %v30
    %v98 = vpop.f32.mrb[0].mxu0
    %v99 = vadd.f32 0.0, %v98
    %v100 = vpop.f32.mrb[0].mxu0
    %v101 = vadd.f32 0.0, %v100
    %102 = vdwg.mxu0
    %v107 = vcombine.low %v22, %v23
    %v108 = vcombine.low %v24, %v25
    %v110 = vunpack.c.l.s4 1983009808
    %v111 = vunpack.c.0.s8 %v110
    %v112 = vlaneseq
    %v113 = vshrl.u32 %v112, 7
    %v114 = vsub.s32 %v111, %v113
    %v115 = vrot.slane %v107, %v114
    %v117 = vunpack.c.l.s4 1983009808
    %v118 = vunpack.c.0.s8 %v117
    %v119 = vlaneseq
    %v120 = vshrl.u32 %v119, 7
    %v121 = vsub.s32 %v118, %v120
    %v122 = vrot.slane %v108, %v121
    %v123 = vcombine.low %v115, %v122
    %v124 = vcombine.high %v115, %v122
    %v127 = vmul.f32 %v99, %v123
    %v128 = vmul.f32 %v101, %v124
    %v129 = vld [vmem:[%s3] sm:$0xff]
    %v130 = vld [vmem:[%s3 + $0x8] sm:$0xff]
    %v131 = vld [vmem:[%s3 + $0x10] sm:$0xff]
    %v132 = vld [vmem:[%s3 + $0x18] sm:$0xff]
    %v133 = vld [vmem:[%s3 + $0x20] sm:$0xff]
    %v134 = vld [vmem:[%s3 + $0x28] sm:$0xff]
    %v135 = vld [vmem:[%s3 + $0x30] sm:$0xff]
    %v136 = vld [vmem:[%s3 + $0x38] sm:$0xff]
    %v137 = vld [vmem:[%s3 + $0x40] sm:$0xff]
    %v138 = vld [vmem:[%s3 + $0x48] sm:$0xff]
    %v139 = vld [vmem:[%s3 + $0x50] sm:$0xff]
    %v140 = vld [vmem:[%s3 + $0x58] sm:$0xff]
    %v141 = vld [vmem:[%s3 + $0x60] sm:$0xff]
    %v142 = vld [vmem:[%s3 + $0x68] sm:$0xff]
    %v143 = vld [vmem:[%s3 + $0x70] sm:$0xff]
    %v144 = vld [vmem:[%s3 + $0x78] sm:$0xff]
    %v145 = vld [vmem:[%s3 + $0x80] sm:$0xff]
    %v146 = vld [vmem:[%s3 + $0x88] sm:$0xff]
    %v147 = vld [vmem:[%s3 + $0x90] sm:$0xff]
    %v148 = vld [vmem:[%s3 + $0x98] sm:$0xff]
    %v149 = vld [vmem:[%s3 + $0xa0] sm:$0xff]
    %v150 = vld [vmem:[%s3 + $0xa8] sm:$0xff]
    %v151 = vld [vmem:[%s3 + $0xb0] sm:$0xff]
    %v152 = vld [vmem:[%s3 + $0xb8] sm:$0xff]
    %v153 = vld [vmem:[%s3 + $0xc0] sm:$0xff]
    %v154 = vld [vmem:[%s3 + $0xc8] sm:$0xff]
    %v155 = vld [vmem:[%s3 + $0xd0] sm:$0xff]
    %v156 = vld [vmem:[%s3 + $0xd8] sm:$0xff]
    %v157 = vld [vmem:[%s3 + $0xe0] sm:$0xff]
    %v158 = vld [vmem:[%s3 + $0xe8] sm:$0xff]
    %v159 = vld [vmem:[%s4] sm:$0x1]
    %v161 = vlaneseq
    %v162 = vshrl.u32 %v161, 7
    %v163 = vsub.s32 0, %v162
    %v164 = vrot.slane %v159, %v163
    %vm166 = vcmask 916480
    %v168 = vsel %vm166, %v128, 0
    %170 = vmatprep.subr.mxu0 0.0
    %171 = vmatpush1.msra.mxu0 %v129
    %172 = vmatprep.subr.mxu0 0.0
    %173 = vmatpush1.msra.mxu0 %v130
    %174 = vmatprep.subr.mxu0 0.0
    %175 = vmatpush1.msra.mxu0 %v131
    %176 = vmatprep.subr.mxu0 0.0
    %177 = vmatpush1.msra.mxu0 %v132
    %178 = vmatprep.subr.mxu0 0.0
    %179 = vmatpush1.msra.mxu0 %v133
    %180 = vmatprep.subr.mxu0 0.0
    %181 = vmatpush1.msra.mxu0 %v134
    %182 = vmatprep.subr.mxu0 0.0
    %183 = vmatpush1.msra.mxu0 %v135
    %184 = vmatprep.subr.mxu0 0.0
    %185 = vmatpush1.msra.mxu0 %v136
    %186 = vmatprep.subr.mxu0 0.0
    %187 = vmatpush1.msra.mxu0 %v137
    %188 = vmatprep.subr.mxu0 0.0
    %189 = vmatpush1.msra.mxu0 %v138
    %190 = vmatprep.subr.mxu0 0.0
    %191 = vmatpush1.msra.mxu0 %v139
    %192 = vmatprep.subr.mxu0 0.0
    %193 = vmatpush1.msra.mxu0 %v140
    %194 = vmatprep.subr.mxu0 0.0
    %195 = vmatpush1.msra.mxu0 %v141
    %196 = vmatprep.subr.mxu0 0.0
    %197 = vmatpush1.msra.mxu0 %v142
    %198 = vmatprep.subr.mxu0 0.0
    %199 = vmatpush1.msra.mxu0 %v143
    %200 = vmatprep.subr.mxu0 0.0
    %201 = vmatpush1.msra.mxu0 %v144
    %202 = vmatprep.subr.mxu0 0.0
    %203 = vmatpush1.msra.mxu0 %v145
    %204 = vmatprep.subr.mxu0 0.0
    %205 = vmatpush1.msra.mxu0 %v146
    %206 = vmatprep.subr.mxu0 0.0
    %207 = vmatpush1.msra.mxu0 %v147
    %208 = vmatprep.subr.mxu0 0.0
    %209 = vmatpush1.msra.mxu0 %v148
    %210 = vmatprep.subr.mxu0 0.0
    %211 = vmatpush1.msra.mxu0 %v149
    %212 = vmatprep.subr.mxu0 0.0
    %213 = vmatpush1.msra.mxu0 %v150
    %214 = vmatprep.subr.mxu0 0.0
    %215 = vmatpush1.msra.mxu0 %v151
    %216 = vmatprep.subr.mxu0 0.0
    %217 = vmatpush1.msra.mxu0 %v152
    %218 = vmatprep.subr.mxu0 0.0
    %219 = vmatpush1.msra.mxu0 %v153
    %220 = vmatprep.subr.mxu0 0.0
    %221 = vmatpush1.msra.mxu0 %v154
    %222 = vmatprep.subr.mxu0 0.0
    %223 = vmatpush1.msra.mxu0 %v155
    %224 = vmatprep.subr.mxu0 0.0
    %225 = vmatpush1.msra.mxu0 %v156
    %226 = vmatprep.subr.mxu0 0.0
    %227 = vmatpush1.msra.mxu0 %v157
    %228 = vmatprep.subr.mxu0 0.0
    %229 = vmatpush1.msra.mxu0 %v158
    %230 = vmatprep.subr.mxu0 0.0
    %231 = vmatpush1.msra.mxu0 0.0
    %232 = vmatprep.subr.mxu0 0.0
    %233 = vmatpush1.msra.mxu0 0.0
    %234 = vmatprep.mubr.f32.mxu0 %v168
    %235 = vmatmul.mubr.f32.gmra.mrb[0].mxu0 %v127
    %v236 = vpop.f32.mrb[0].mxu0
    %v237 = vadd.f32 %v164, %v236
    %v238 = vpop.f32.mrb[0].mxu0
    %239 = vdwg.mxu0
    %vm240 = vcmask 261120
    %241 = vst.msk [vmem:[#allocation2] sm:$0xff] %vm240, %v237
    // Predicated region
    $region22: #{tpu_custom_call.1} parent=1 // pred_check
      _
    $region23: #{tpu_custom_call.1} parent=1 // pred_check_branch
      %243 = sbr.rel (0) target = $region25
    $region24: #{tpu_custom_call.1} parent=1 // pred_region
      %s245 = ssub.s32 128, 32
      %246 = vsyncadd [#allocation3], %s245
      %s247 = sshll.u32 [#allocation2], 4
      %s248 = int_to_ptr.vmem [resolvable:$true] %s247
      %253 = dma.vmem_to_hbm [thread:$0]  %s248, 32, %s5, [#allocation3], 32, 32, 2
    $region25: #{tpu_custom_call.1} parent=1 // pred_fallthru
      _
    // Predicated region
    $region26: #{tpu_custom_call.1} parent=1 // pred_check
      _
    $region27: #{tpu_custom_call.1} parent=1 // pred_check_branch
      %255 = sbr.rel (0) target = $region29
    $region28: #{tpu_custom_call.1} parent=1 // pred_region
      %256 = dma.done [#allocation3], 128
    $region29: #{tpu_custom_call.1} parent=1 // pred_fallthru
      _
    %257 = vsyncpa [#allocation3], 1

</llo_original>
